<compile_context>
chip_gen: v6e
topology: v6e:2x2x1
jax: 0.10.0
libtpu: 0.0.40
codegen_flags: <defaults>
</compile_context>

<pallas_src>
import functools

import jax
import jax.numpy as jnp
from jax import lax
from jax.experimental import pallas as pl
from jax.experimental.pallas import tpu as pltpu


def _round_up(x, m):
    return ((x + m - 1) // m) * m


def _pick_tile(dim, target, align):
    """Largest tile <= target that is a multiple of `align` and divides
    round_up(dim, align) (so arrays whose dim is already aligned need no pad)."""
    dim_r = _round_up(max(dim, 1), align)
    t = _round_up(min(target, dim_r), align)
    while dim_r % t != 0:
        t -= align
    return t


def _auto_config():
    """(tm, tn, tk, vmem_limit_bytes) targets per TPU generation."""
    kind = ""
    try:
        kind = jax.devices()[0].device_kind.lower()
    except Exception:
        pass
    if "v7" in kind:
        return 512, 1024, 1024, 48 << 20, 7
    if "v6" in kind:
        return 1024, 2048, 1024, 100 << 20, 6
    if "v5" in kind:
        return 512, 512, 2048, 64 << 20, 5
    return 512, 1024, 1024, 64 << 20, 0


def _lora_linear_kernel(x_ref, w_ref, bias_ref, p_ref, b_ref, o_ref, acc_ref):
    # x_ref:   (tm, tk)   activations
    # w_ref:   (tn, tk)   base weight block (PyTorch layout: out x in)
    # bias_ref:(1,  tn)
    # p_ref:   (tm, r)    pre-scaled (x @ A.T) * (lora_scaling / lora_dim)
    # b_ref:   (tn, r)    lora_left_weight block
    # o_ref:   (tm, tn)
    # acc_ref: (tm, tn)   f32 scratch (base matmul accumulator over K)
    k = pl.program_id(2)

    @pl.when(k == 0)
    def _():
        acc_ref[...] = jnp.zeros_like(acc_ref)

    # base: (tm, tk) . (tn, tk) contracting the K axis of both -> (tm, tn)
    acc_ref[...] += lax.dot_general(
        x_ref[...], w_ref[...], (((1,), (1,)), ((), ())),
        preferred_element_type=jnp.float32)

    @pl.when(k == pl.num_programs(2) - 1)
    def _():
        # LoRA apply: (tm, r) . (tn, r) -> (tm, tn), tiny contraction.
        lora = lax.dot_general(
            p_ref[...], b_ref[...], (((1,), (1,)), ((), ())),
            preferred_element_type=jnp.float32)
        out = acc_ref[...] + lora + bias_ref[...].astype(jnp.float32)
        o_ref[...] = out.astype(o_ref.dtype)


def lora_linear(x, weight, bias, lora_right_weight, lora_left_weight,
                lora_scaling=1.0, lora_dim=None, *,
                tm=None, tn=None, tk=None,
                compute_dtype=jnp.bfloat16, out_dtype=None,
                vmem_limit_bytes=None):
    """Pallas implementation of LinearLayer_LoRA.forward (unfused path).

    x:                 (..., in_features)
    weight:            (out_features, in_features)
    bias:              (out_features,) or None
    lora_right_weight: (lora_dim, in_features)
    lora_left_weight:  (out_features, lora_dim)
    compute_dtype:     default bf16 (MXU fast path, f32 accumulation).
                       Pass jnp.float32 / None to keep input precision.
    """
    if lora_dim is None:
        lora_dim = lora_right_weight.shape[0]
    scaling = float(lora_scaling) / float(lora_dim)

    out_features, in_features = weight.shape
    lead_shape = x.shape[:-1]
    M = 1
    for d in lead_shape:
        M *= d
    K = in_features
    N = out_features
    r = lora_dim

    if out_dtype is None:
        out_dtype = x.dtype
    if compute_dtype is not None:
        x = x.astype(compute_dtype)
        weight = weight.astype(compute_dtype)
        lora_right_weight = lora_right_weight.astype(compute_dtype)
        lora_left_weight = lora_left_weight.astype(compute_dtype)
        # bias stays in its original dtype (added in f32 in the epilogue).

    # ---- tile selection (generation-aware, divisor-based -> no weight pad
    # for typical power-of-two layers; small-M decode calls collapse to a
    # single i block so W streams exactly once) ----
    a_tm, a_tn, a_tk, a_vmem, gen = _auto_config()
    tm = a_tm if tm is None else tm
    tn = a_tn if tn is None else tn
    tk = a_tk if tk is None else tk
    if vmem_limit_bytes is None:
        vmem_limit_bytes = a_vmem

    tm = _pick_tile(M, tm, 8)
    tn = _pick_tile(N, tn, 128)
    tk = _pick_tile(K, tk, 128)
    Mp = _round_up(M, tm)
    Np = _round_up(N, tn)
    Kp = _round_up(K, tk)

    # v7x: make sure the two TensorCores both get parallel work.
    if gen == 7:
        while (Mp // tm) * (Np // tn) < 2 and tn > 128 and tn % 256 == 0:
            tn //= 2

    # ---- wrapper-side prep ----
    x2 = x.reshape(M, K)

    # LoRA intermediate P = (x @ A.T) * scaling, computed once (tiny M x r),
    # with f32 accumulation, then cast to the streaming dtype.
    p = lax.dot_general(x2, lora_right_weight, (((1,), (1,)), ((), ())),
                        preferred_element_type=jnp.float32)
    p = (p * scaling).astype(x2.dtype)

    if (Mp, Kp) != (M, K):
        x2 = jnp.pad(x2, ((0, Mp - M), (0, Kp - K)))
    if Mp != M:
        p = jnp.pad(p, ((0, Mp - M), (0, 0)))
    w_p = weight
    if (Np, Kp) != (N, K):   # no-op for aligned production shapes
        w_p = jnp.pad(w_p, ((0, Np - N), (0, Kp - K)))
    b_p = lora_left_weight
    if Np != N:
        b_p = jnp.pad(b_p, ((0, Np - N), (0, 0)))
    if bias is None:
        bias2 = jnp.zeros((1, Np), dtype=jnp.float32)
    else:
        bias2 = bias.reshape(1, N)
        if Np != N:
            bias2 = jnp.pad(bias2, ((0, 0), (0, Np - N)))

    grid_i, grid_j, grid_k = Mp // tm, Np // tn, Kp // tk

    in_item = jnp.dtype(x2.dtype).itemsize
    cost = pl.CostEstimate(
        flops=2 * Mp * Np * Kp + 2 * Mp * r * Np,
        transcendentals=0,
        bytes_accessed=int(
            grid_j * Mp * Kp * in_item            # x re-streamed per j block
            + grid_i * Np * Kp * in_item          # W re-streamed per i block
            + grid_j * Mp * r * in_item           # P re-streamed per j block
            + grid_i * Np * r * in_item           # B re-streamed per i block
            + grid_i * Np * jnp.dtype(bias2.dtype).itemsize
            + Mp * Np * jnp.dtype(out_dtype).itemsize),
    )

    out2 = pl.pallas_call(
        _lora_linear_kernel,
        out_shape=jax.ShapeDtypeStruct((Mp, Np), out_dtype),
        grid_spec=pltpu.PrefetchScalarGridSpec(
            num_scalar_prefetch=0,
            grid=(grid_i, grid_j, grid_k),
            in_specs=[
                pl.BlockSpec((tm, tk), lambda i, j, k: (i, k)),   # x
                pl.BlockSpec((tn, tk), lambda i, j, k: (j, k)),   # W (out x in)
                pl.BlockSpec((1, tn), lambda i, j, k: (0, j)),    # bias
                pl.BlockSpec((tm, r), lambda i, j, k: (i, 0)),    # P = scaled x@A.T
                pl.BlockSpec((tn, r), lambda i, j, k: (j, 0)),    # B
            ],
            out_specs=pl.BlockSpec((tm, tn), lambda i, j, k: (i, j)),
            scratch_shapes=[
                pltpu.VMEM((tm, tn), jnp.float32),   # base matmul accumulator
            ],
        ),
        compiler_params=pltpu.CompilerParams(
            dimension_semantics=("parallel", "parallel", "arbitrary"),
            vmem_limit_bytes=int(vmem_limit_bytes)),
        cost_estimate=cost,
    )(x2, w_p, bias2, p, b_p)

    if (Mp, Np) != (M, N):
        out2 = out2[:M, :N]
    return out2.reshape(*lead_shape, N)


if __name__ == "__main__":
    import math

    key = jax.random.PRNGKey(0)
    k_x, k_w, k_b, k_a, k_l = jax.random.split(key, 5)

    batch, seq = 2, 8
    in_features = 32    # "columns" / fan_in
    out_features = 48   # "rows"
    lora_dim = 4
    lora_scaling = 1.0

    dtype = jnp.float32
    x = jax.random.normal(k_x, (batch, seq, in_features), dtype=dtype)
    weight = jax.random.normal(k_w, (out_features, in_features), dtype=dtype) * 0.05
    bias = jax.random.normal(k_b, (out_features,), dtype=dtype) * 0.1

    # lora_right_weight: kaiming_uniform(a=sqrt(5)) with fan_in = in_features
    gain = math.sqrt(2.0 / (1.0 + 5.0))
    bound = math.sqrt(3.0) * gain / math.sqrt(in_features)
    lora_right_weight = jax.random.uniform(
        k_a, (lora_dim, in_features), dtype=dtype, minval=-bound, maxval=bound)
    # NOTE: the module's reset_parameters() zero-initializes lora_left_weight;
    # we use small nonzero values here so the LoRA matmul path is exercised.
    lora_left_weight = jax.random.normal(k_l, (out_features, lora_dim), dtype=dtype) * 0.02

    # Pure-JAX reference (matches PyTorch forward semantics exactly).
    scaling = lora_scaling / lora_dim
    ref = (jnp.einsum("bsk,nk->bsn", x, weight) + bias
           + (x @ lora_right_weight.T @ lora_left_weight.T) * scaling)

    # 1) Default path: bf16 compute with f32 accumulation (looser tolerance).
    out_bf16 = lora_linear(x, weight, bias, lora_right_weight, lora_left_weight,
                           lora_scaling=lora_scaling, lora_dim=lora_dim)
    out_bf16 = jax.block_until_ready(out_bf16)
    assert out_bf16.shape == (batch, seq, out_features)
    assert out_bf16.dtype == x.dtype
    assert jnp.allclose(out_bf16, ref, atol=2e-2, rtol=2e-2), "bf16 path mismatch"

    # 2) Full-precision path (explicit override), tight tolerance.
    out_f32 = lora_linear(x, weight, bias, lora_right_weight, lora_left_weight,
                          lora_scaling=lora_scaling, lora_dim=lora_dim,
                          compute_dtype=jnp.float32)
    out_f32 = jax.block_until_ready(out_f32)
    assert jnp.allclose(out_f32, ref, atol=1e-5, rtol=1e-5), "f32 path mismatch"

    print("KERNEL_OK")
</pallas_src>

<mosaic_0001>
module attributes {stable_mosaic.version = 11 : i64} {
  func.func @_lora_linear_kernel(%arg0: i32, %arg1: i32, %arg2: i32, %arg3: memref<16x128xbf16, #tpu.memory_space<vmem>>, %arg4: memref<128x128xbf16, #tpu.memory_space<vmem>>, %arg5: memref<1x128xf32, #tpu.memory_space<vmem>>, %arg6: memref<16x4xbf16, #tpu.memory_space<vmem>>, %arg7: memref<128x4xbf16, #tpu.memory_space<vmem>>, %arg8: memref<16x128xf32, #tpu.memory_space<vmem>>, %arg9: memref<16x128xf32, #tpu.memory_space<vmem>>) attributes {dimension_semantics = [#tpu.dimension_semantics<parallel>, #tpu.dimension_semantics<parallel>, #tpu.dimension_semantics<arbitrary>], iteration_bounds = array<i64: 1, 1, 1>, scalar_prefetch = 0 : i64, scratch_operands = 1 : i64, tpu.core_type = #tpu.core_type<tc>, window_params = [{transform_indices = @transform_0, window_bounds = array<i64: 16, 128>}, {transform_indices = @transform_1, window_bounds = array<i64: 128, 128>}, {transform_indices = @transform_2, window_bounds = array<i64: 1, 128>}, {transform_indices = @transform_3, window_bounds = array<i64: 16, 4>}, {transform_indices = @transform_4, window_bounds = array<i64: 128, 4>}, {transform_indices = @transform_5, window_bounds = array<i64: 16, 128>}]} {
    %c0_i32 = arith.constant 0 : i32
    %0 = arith.cmpi eq, %arg2, %c0_i32 : i32
    %1 = arith.extui %0 : i1 to i32
    %c0_i32_0 = arith.constant 0 : i32
    %2 = arith.cmpi ne, %1, %c0_i32_0 : i32
    scf.if %2 {
      %cst_10 = arith.constant 0.000000e+00 : f32
      %12 = vector.broadcast %cst_10 : f32 to vector<16x128xf32>
      %c0_11 = arith.constant 0 : index
      %c0_12 = arith.constant 0 : index
      %13 = vector.load %arg9[%c0_11, %c0_12] : memref<16x128xf32, #tpu.memory_space<vmem>>, vector<16x128xf32>
      tpu.vector_store %arg9[%c0_11, %c0_12], %12 {strides = array<i32>} : memref<16x128xf32, #tpu.memory_space<vmem>>, vector<16x128xf32>,
    } else {
    }
    %c0 = arith.constant 0 : index
    %c0_1 = arith.constant 0 : index
    %3 = vector.load %arg9[%c0, %c0_1] : memref<16x128xf32, #tpu.memory_space<vmem>>, vector<16x128xf32>
    %c0_2 = arith.constant 0 : index
    %c0_3 = arith.constant 0 : index
    %4 = vector.load %arg3[%c0_2, %c0_3] : memref<16x128xbf16, #tpu.memory_space<vmem>>, vector<16x128xbf16>
    %c0_4 = arith.constant 0 : index
    %c0_5 = arith.constant 0 : index
    %5 = vector.load %arg4[%c0_4, %c0_5] : memref<128x128xbf16, #tpu.memory_space<vmem>>, vector<128x128xbf16>
    %cst = arith.constant dense<0.000000e+00> : vector<16x128xf32>
    %6 = tpu.matmul %4, %5, %cst {dimension_numbers = #tpu.dot_dimension_numbers<[1], [1], [0], [0], [0, 0, 1, 0], [], []>} : vector<16x128xbf16>, vector<128x128xbf16>, vector<16x128xf32> -> vector<16x128xf32>
    %7 = arith.addf %3, %6 : vector<16x128xf32>
    %c0_6 = arith.constant 0 : index
    %c0_7 = arith.constant 0 : index
    %8 = vector.load %arg9[%c0_6, %c0_7] : memref<16x128xf32, #tpu.memory_space<vmem>>, vector<16x128xf32>
    tpu.vector_store %arg9[%c0_6, %c0_7], %7 {strides = array<i32>} : memref<16x128xf32, #tpu.memory_space<vmem>>, vector<16x128xf32>,
    %c0_i32_8 = arith.constant 0 : i32
    %9 = arith.cmpi eq, %arg2, %c0_i32_8 : i32
    %10 = arith.extui %9 : i1 to i32
    %c0_i32_9 = arith.constant 0 : i32
    %11 = arith.cmpi ne, %10, %c0_i32_9 : i32
    scf.if %11 {
      %c0_10 = arith.constant 0 : index
      %c0_11 = arith.constant 0 : index
      %12 = vector.load %arg6[%c0_10, %c0_11] : memref<16x4xbf16, #tpu.memory_space<vmem>>, vector<16x4xbf16>
      %c0_12 = arith.constant 0 : index
      %c0_13 = arith.constant 0 : index
      %13 = vector.load %arg7[%c0_12, %c0_13] : memref<128x4xbf16, #tpu.memory_space<vmem>>, vector<128x4xbf16>
      %cst_14 = arith.constant dense<0.000000e+00> : vector<16x128xf32>
      %14 = tpu.matmul %12, %13, %cst_14 {dimension_numbers = #tpu.dot_dimension_numbers<[1], [1], [0], [0], [0, 0, 1, 0], [], []>} : vector<16x4xbf16>, vector<128x4xbf16>, vector<16x128xf32> -> vector<16x128xf32>
      %c0_15 = arith.constant 0 : index
      %c0_16 = arith.constant 0 : index
      %15 = vector.load %arg9[%c0_15, %c0_16] : memref<16x128xf32, #tpu.memory_space<vmem>>, vector<16x128xf32>
      %16 = arith.addf %15, %14 : vector<16x128xf32>
      %c0_17 = arith.constant 0 : index
      %c0_18 = arith.constant 0 : index
      %17 = vector.load %arg5[%c0_17, %c0_18] : memref<1x128xf32, #tpu.memory_space<vmem>>, vector<1x128xf32>
      %18 = vector.broadcast %17 : vector<1x128xf32> to vector<16x128xf32>
      %19 = arith.addf %16, %18 : vector<16x128xf32>
      %c0_19 = arith.constant 0 : index
      %c0_20 = arith.constant 0 : index
      %20 = vector.load %arg8[%c0_19, %c0_20] : memref<16x128xf32, #tpu.memory_space<vmem>>, vector<16x128xf32>
      tpu.vector_store %arg8[%c0_19, %c0_20], %19 {strides = array<i32>} : memref<16x128xf32, #tpu.memory_space<vmem>>, vector<16x128xf32>,
    } else {
    }
    return
  }
  func.func @transform_0(%arg0: i32, %arg1: i32, %arg2: i32) -> (i32, i32) {
    %c0_i32 = arith.constant 0 : i32
    return %arg0, %arg2 : i32, i32
  }
  func.func @transform_1(%arg0: i32, %arg1: i32, %arg2: i32) -> (i32, i32) {
    %c0_i32 = arith.constant 0 : i32
    return %arg1, %arg2 : i32, i32
  }
  func.func @transform_2(%arg0: i32, %arg1: i32, %arg2: i32) -> (i32, i32) {
    %c0_i32 = arith.constant 0 : i32
    %c0_i32_0 = arith.constant 0 : i32
    return %c0_i32, %arg1 : i32, i32
  }
  func.func @transform_3(%arg0: i32, %arg1: i32, %arg2: i32) -> (i32, i32) {
    %c0_i32 = arith.constant 0 : i32
    %c0_i32_0 = arith.constant 0 : i32
    return %arg0, %c0_i32 : i32, i32
  }
  func.func @transform_4(%arg0: i32, %arg1: i32, %arg2: i32) -> (i32, i32) {
    %c0_i32 = arith.constant 0 : i32
    %c0_i32_0 = arith.constant 0 : i32
    return %arg1, %c0_i32 : i32, i32
  }
  func.func @transform_5(%arg0: i32, %arg1: i32, %arg2: i32) -> (i32, i32) {
    %c0_i32 = arith.constant 0 : i32
    return %arg0, %arg1 : i32, i32
  }
}

</mosaic_0001>

<llo_original>
// kernel: tpu_custom_call.1
$region0: #{tpu_custom_call.1}
  #allocation0 [shape = 'u32[]', space=smem, size = 0x4, offset = 0x4, fixed_abs, tag = 'smem constant byte address 0x4 - core index']
  #allocation1 [shape = 'u32[144,128]{1,0:T(1,128)}', space=vmem, size = 0x12000, scoped, tag = 'internal scratch']
  #allocation2 [shape = 'f32[16,128]{1,0:T(8,128)}', space=vmem, size = 0x2000, scoped, tag = 'scratch operand']
  %s0 = inlined_call_operand.vmem [shape: bf16[16,128], index: 0, kind: input, shape index: {}]
  %s1 = inlined_call_operand.vmem [shape: bf16[128,128], index: 1, kind: input, shape index: {}]
  %s2 = inlined_call_operand.vmem [shape: f32[1,128], index: 2, kind: input, shape index: {}]
  %s3 = inlined_call_operand.vmem [shape: bf16[16,4], index: 3, kind: input, shape index: {}]
  %s4 = inlined_call_operand.vmem [shape: bf16[128,4], index: 4, kind: input, shape index: {}]
  %s5 = inlined_call_operand.hbm [shape: f32[16,128], index: 5, kind: output, shape index: {}]
  %s6 = sld [smem:[#allocation0]]
  $region38: #{tpu_custom_call.1} parent=0
    _
  %s8 = ssub.s32 1, %s6
  %s9 = scalar_select 0, %s8, %s6
  $region1: #{tpu_custom_call.1} parent=0
    #allocation3 [shape = 'u8[8192]{0}', space=vmem, size = 0x2000, scoped, tag = 'output window, operand 0, single buffered']
    #allocation4 [shape = 's32[1]{0}', space=sflag, size = 0x4, scoped, tag = 'scoped memory for tpu_custom_call.1']
    %10 = vsyncpa [#allocation4], 0
    // Predicated region
    $region2: #{tpu_custom_call.1} parent=1 // pred_check
      _
    $region3: #{tpu_custom_call.1} parent=1 // pred_check_branch
      %12 = sbr.rel (0) target = $region5
    $region4: #{tpu_custom_call.1} parent=1 // pred_region
      _
    $region5: #{tpu_custom_call.1} parent=1 // pred_fallthru
      _
    // Predicated region
    $region6: #{tpu_custom_call.1} parent=1 // pred_check
      _
    $region7: #{tpu_custom_call.1} parent=1 // pred_check_branch
      %14 = sbr.rel (0) target = $region9
    $region8: #{tpu_custom_call.1} parent=1 // pred_region
      _
    $region9: #{tpu_custom_call.1} parent=1 // pred_fallthru
      _
    // Predicated region
    $region10: #{tpu_custom_call.1} parent=1 // pred_check
      _
    $region11: #{tpu_custom_call.1} parent=1 // pred_check_branch
      %16 = sbr.rel (0) target = $region13
    $region12: #{tpu_custom_call.1} parent=1 // pred_region
      _
    $region13: #{tpu_custom_call.1} parent=1 // pred_fallthru
      _
    // Predicated region
    $region14: #{tpu_custom_call.1} parent=1 // pred_check
      _
    $region15: #{tpu_custom_call.1} parent=1 // pred_check_branch
      %18 = sbr.rel (0) target = $region17
    $region16: #{tpu_custom_call.1} parent=1 // pred_region
      _
    $region17: #{tpu_custom_call.1} parent=1 // pred_fallthru
      _
    // Predicated region
    $region18: #{tpu_custom_call.1} parent=1 // pred_check
      _
    $region19: #{tpu_custom_call.1} parent=1 // pred_check_branch
      %20 = sbr.rel (0) target = $region21
    $region20: #{tpu_custom_call.1} parent=1 // pred_region
      _
    $region21: #{tpu_custom_call.1} parent=1 // pred_fallthru
      _
    %p22 = scmp.eq.s32.totalorder 0, 0
    // Predicated region
    $region22: #{tpu_custom_call.1} parent=1 // pred_check
      %p23 = pneg %p22
    $region23: #{tpu_custom_call.1} parent=1 // pred_check_branch
      %25 = sbr.rel (%p23) target = $region25
    $region24: #{tpu_custom_call.1} parent=1 // pred_region
      %26 = vst [vmem:[#allocation2] sm:$0xff] 0.0
      %27 = vst [vmem:[#allocation2 + $0x8] sm:$0xff] 0.0
    $region25: #{tpu_custom_call.1} parent=1 // pred_fallthru
      _
    %v28 = vld [vmem:[#allocation2] sm:$0xff]
    %v29 = vld [vmem:[#allocation2 + $0x8] sm:$0xff]
    %v30 = vld [vmem:[%s0] sm:$0xf]
    %v31 = vld [vmem:[%s0 + $0x4] sm:$0xf]
    %v32 = vld [vmem:[%s1] sm:$0xf]
    %v33 = vld [vmem:[%s1 + $0x4] sm:$0xf]
    %v34 = vld [vmem:[%s1 + $0x8] sm:$0xf]
    %v35 = vld [vmem:[%s1 + $0xc] sm:$0xf]
    %v36 = vld [vmem:[%s1 + $0x10] sm:$0xf]
    %v37 = vld [vmem:[%s1 + $0x14] sm:$0xf]
    %v38 = vld [vmem:[%s1 + $0x18] sm:$0xf]
    %v39 = vld [vmem:[%s1 + $0x1c] sm:$0xf]
    %v40 = vld [vmem:[%s1 + $0x20] sm:$0xf]
    %v41 = vld [vmem:[%s1 + $0x24] sm:$0xf]
    %v42 = vld [vmem:[%s1 + $0x28] sm:$0xf]
    %v43 = vld [vmem:[%s1 + $0x2c] sm:$0xf]
    %v44 = vld [vmem:[%s1 + $0x30] sm:$0xf]
    %v45 = vld [vmem:[%s1 + $0x34] sm:$0xf]
    %v46 = vld [vmem:[%s1 + $0x38] sm:$0xf]
    %v47 = vld [vmem:[%s1 + $0x3c] sm:$0xf]
    %v50 = vunpack.c.l.b16 %v30
    %v51 = vunpack.c.l.b16 %v31
    %v52 = vpack.c.b16 %v51, %v50
    %v70 = vunpack.c.l.b16 %v32
    %v71 = vunpack.c.l.b16 %v33
    %v72 = vunpack.c.l.b16 %v34
    %v73 = vunpack.c.l.b16 %v35
    %v74 = vunpack.c.l.b16 %v36
    %v75 = vunpack.c.l.b16 %v37
    %v76 = vunpack.c.l.b16 %v38
    %v77 = vunpack.c.l.b16 %v39
    %v78 = vunpack.c.l.b16 %v40
    %v79 = vunpack.c.l.b16 %v41
    %v80 = vunpack.c.l.b16 %v42
    %v81 = vunpack.c.l.b16 %v43
    %v82 = vunpack.c.l.b16 %v44
    %v83 = vunpack.c.l.b16 %v45
    %v84 = vunpack.c.l.b16 %v46
    %v85 = vunpack.c.l.b16 %v47
    %v86 = vpack.c.b16 %v71, %v70
    %v87 = vpack.c.b16 %v73, %v72
    %v88 = vpack.c.b16 %v75, %v74
    %v89 = vpack.c.b16 %v77, %v76
    %v90 = vpack.c.b16 %v79, %v78
    %v91 = vpack.c.b16 %v81, %v80
    %v92 = vpack.c.b16 %v83, %v82
    %v93 = vpack.c.b16 %v85, %v84
    %102 = vmatprep.subr.bf16.mxu0 0
    %103 = vmatpush1.bf16.xpose.msra.mxu0 %v93
    %104 = vmatprep.subr.bf16.mxu0 0
    %105 = vmatpush1.bf16.xpose.msra.mxu0 %v92
    %106 = vmatprep.subr.bf16.mxu0 0
    %107 = vmatpush1.bf16.xpose.msra.mxu0 %v91
    %108 = vmatprep.subr.bf16.mxu0 0
    %109 = vmatpush1.bf16.xpose.msra.mxu0 %v90
    %110 = vmatprep.subr.bf16.mxu0 0
    %111 = vmatpush1.bf16.xpose.msra.mxu0 %v89
    %112 = vmatprep.subr.bf16.mxu0 0
    %113 = vmatpush1.bf16.xpose.msra.mxu0 %v88
    %114 = vmatprep.subr.bf16.mxu0 0
    %115 = vmatpush1.bf16.xpose.msra.mxu0 %v87
    %116 = vmatprep.subr.bf16.mxu0 0
    %117 = vmatpush1.bf16.xpose.msra.mxu0 %v86
    %118 = vmatprep.subr.bf16.mxu0 0
    %119 = vmatpush2.bf16.xpose.msra.mxu0 0
    %120 = vmatprep.subr.bf16.mxu0 0
    %121 = vmatpush2.bf16.xpose.msra.mxu0 0
    %122 = vmatprep.subr.bf16.mxu0 0
    %123 = vmatpush2.bf16.xpose.msra.mxu0 0
    %124 = vmatprep.subr.bf16.mxu0 0
    %125 = vmatpush2.bf16.xpose.msra.mxu0 0
    %126 = vmatprep.subr.bf16.mxu0 0
    %127 = vmatpush2.bf16.xpose.msra.mxu0 0
    %128 = vmatprep.subr.bf16.mxu0 0
    %129 = vmatpush2.bf16.xpose.msra.mxu0 0
    %130 = vmatprep.subr.bf16.mxu0 0
    %131 = vmatpush2.bf16.xpose.msra.mxu0 0
    %132 = vmatprep.subr.bf16.mxu0 0
    %133 = vmatpush2.bf16.xpose.msra.mxu0 0
    %134 = vmatprep.mubr.bf16.mxu0 0
    %135 = vmatmul.mubr.bf16.gmra.mxu0 %v52
    %v136 = vpop.f32.mrf.mxu0
    %v137 = vadd.f32 0.0, %v136
    %v138 = vpop.f32.mrf.mxu0
    %v139 = vpop.f32.mrf.mxu0
    %v140 = vadd.f32 0.0, %v139
    %v141 = vpop.f32.mrf.mxu0
    %142 = vdwg.mxu0
    %v143 = vadd.f32 %v28, %v137
    %v144 = vadd.f32 %v29, %v140
    %145 = vst [vmem:[#allocation2] sm:$0xff] %v143
    %146 = vst [vmem:[#allocation2 + $0x8] sm:$0xff] %v144
    // Predicated region
    $region26: #{tpu_custom_call.1} parent=1 // pred_check
      %p147 = pneg %p22
    $region27: #{tpu_custom_call.1} parent=1 // pred_check_branch
      %149 = sbr.rel (%p147) target = $region29
    $region28: #{tpu_custom_call.1} parent=1 // pred_region
      %v150 = vld [vmem:[%s3] sm:$0xf]
      %v151 = vld [vmem:[%s3 + $0x4] sm:$0xf]
      %v152 = vld [vmem:[%s4] sm:$0xf]
      %v153 = vld [vmem:[%s4 + $0x4] sm:$0xf]
      %v154 = vld [vmem:[%s4 + $0x8] sm:$0xf]
      %v155 = vld [vmem:[%s4 + $0xc] sm:$0xf]
      %v156 = vld [vmem:[%s4 + $0x10] sm:$0xf]
      %v157 = vld [vmem:[%s4 + $0x14] sm:$0xf]
      %v158 = vld [vmem:[%s4 + $0x18] sm:$0xf]
      %v159 = vld [vmem:[%s4 + $0x1c] sm:$0xf]
      %v160 = vld [vmem:[%s4 + $0x20] sm:$0xf]
      %v161 = vld [vmem:[%s4 + $0x24] sm:$0xf]
      %v162 = vld [vmem:[%s4 + $0x28] sm:$0xf]
      %v163 = vld [vmem:[%s4 + $0x2c] sm:$0xf]
      %v164 = vld [vmem:[%s4 + $0x30] sm:$0xf]
      %v165 = vld [vmem:[%s4 + $0x34] sm:$0xf]
      %v166 = vld [vmem:[%s4 + $0x38] sm:$0xf]
      %v167 = vld [vmem:[%s4 + $0x3c] sm:$0xf]
      %v170 = vunpack.c.l.b16 %v150
      %v171 = vunpack.c.l.b16 %v151
      %v172 = vpack.c.b16 %v171, %v170
      %v189 = vunpack.c.l.b16 %v152
      %v190 = vunpack.c.l.b16 %v153
      %v191 = vunpack.c.l.b16 %v154
      %v192 = vunpack.c.l.b16 %v155
      %v193 = vunpack.c.l.b16 %v156
      %v194 = vunpack.c.l.b16 %v157
      %v195 = vunpack.c.l.b16 %v158
      %v196 = vunpack.c.l.b16 %v159
      %v197 = vunpack.c.l.b16 %v160
      %v198 = vunpack.c.l.b16 %v161
      %v199 = vunpack.c.l.b16 %v162
      %v200 = vunpack.c.l.b16 %v163
      %v201 = vunpack.c.l.b16 %v164
      %v202 = vunpack.c.l.b16 %v165
      %v203 = vunpack.c.l.b16 %v166
      %v204 = vunpack.c.l.b16 %v167
      %v205 = vpack.c.b16 %v190, %v189
      %v206 = vpack.c.b16 %v192, %v191
      %v207 = vpack.c.b16 %v194, %v193
      %v208 = vpack.c.b16 %v196, %v195
      %v209 = vpack.c.b16 %v198, %v197
      %v210 = vpack.c.b16 %v200, %v199
      %v211 = vpack.c.b16 %v202, %v201
      %v212 = vpack.c.b16 %v204, %v203
      %vm213 = vcmask 31744
      %v215 = vsel %vm213, %v172, 0
      %v218 = vsel %vm213, %v205, 0
      %v221 = vsel %vm213, %v206, 0
      %v224 = vsel %vm213, %v207, 0
      %v227 = vsel %vm213, %v208, 0
      %v230 = vsel %vm213, %v209, 0
      %v233 = vsel %vm213, %v210, 0
      %v236 = vsel %vm213, %v211, 0
      %v239 = vsel %vm213, %v212, 0
      %241 = vmatprep.subr.bf16.mxu0 0
      %242 = vmatpush1.bf16.xpose.msra.mxu0 %v239
      %243 = vmatprep.subr.bf16.mxu0 0
      %244 = vmatpush1.bf16.xpose.msra.mxu0 %v236
      %245 = vmatprep.subr.bf16.mxu0 0
      %246 = vmatpush1.bf16.xpose.msra.mxu0 %v233
      %247 = vmatprep.subr.bf16.mxu0 0
      %248 = vmatpush1.bf16.xpose.msra.mxu0 %v230
      %249 = vmatprep.subr.bf16.mxu0 0
      %250 = vmatpush1.bf16.xpose.msra.mxu0 %v227
      %251 = vmatprep.subr.bf16.mxu0 0
      %252 = vmatpush1.bf16.xpose.msra.mxu0 %v224
      %253 = vmatprep.subr.bf16.mxu0 0
      %254 = vmatpush1.bf16.xpose.msra.mxu0 %v221
      %255 = vmatprep.subr.bf16.mxu0 0
      %256 = vmatpush1.bf16.xpose.msra.mxu0 %v218
      %257 = vmatprep.subr.bf16.mxu0 0
      %258 = vmatpush2.bf16.xpose.msra.mxu0 0
      %259 = vmatprep.subr.bf16.mxu0 0
      %260 = vmatpush2.bf16.xpose.msra.mxu0 0
      %261 = vmatprep.subr.bf16.mxu0 0
      %262 = vmatpush2.bf16.xpose.msra.mxu0 0
      %263 = vmatprep.subr.bf16.mxu0 0
      %264 = vmatpush2.bf16.xpose.msra.mxu0 0
      %265 = vmatprep.subr.bf16.mxu0 0
      %266 = vmatpush2.bf16.xpose.msra.mxu0 0
      %267 = vmatprep.subr.bf16.mxu0 0
      %268 = vmatpush2.bf16.xpose.msra.mxu0 0
      %269 = vmatprep.subr.bf16.mxu0 0
      %270 = vmatpush2.bf16.xpose.msra.mxu0 0
      %271 = vmatprep.subr.bf16.mxu0 0
      %272 = vmatpush2.bf16.xpose.msra.mxu0 0
      %273 = vmatprep.mubr.bf16.mxu0 0
      %274 = vmatmul.mubr.bf16.gmra.mxu0 %v215
      %v275 = vpop.f32.mrf.mxu0
      %v276 = vadd.f32 0.0, %v275
      %v277 = vpop.f32.mrf.mxu0
      %v278 = vpop.f32.mrf.mxu0
      %v279 = vadd.f32 0.0, %v278
      %v280 = vpop.f32.mrf.mxu0
      %281 = vdwg.mxu0
      %v282 = vld [vmem:[#allocation2] sm:$0xff]
      %v283 = vld [vmem:[#allocation2 + $0x8] sm:$0xff]
      %v284 = vadd.f32 %v282, %v276
      %v285 = vadd.f32 %v283, %v279
      %v286 = vld [vmem:[%s2] sm:$0x1]
      %v288 = vlaneseq
      %v289 = vshrl.u32 %v288, 7
      %v290 = vsub.s32 0, %v289
      %v291 = vrot.slane %v286, %v290
      %v293 = vadd.f32 %v284, %v291
      %v294 = vadd.f32 %v285, %v291
      %295 = vst [vmem:[#allocation3] sm:$0xff] %v293
      %296 = vst [vmem:[#allocation3 + $0x8] sm:$0xff] %v294
    $region29: #{tpu_custom_call.1} parent=1 // pred_fallthru
      _
    // Predicated region
    $region30: #{tpu_custom_call.1} parent=1 // pred_check
      _
    $region31: #{tpu_custom_call.1} parent=1 // pred_check_branch
      %298 = sbr.rel (0) target = $region33
    $region32: #{tpu_custom_call.1} parent=1 // pred_region
      %s300 = ssub.s32 256, 256
      %301 = vsyncadd [#allocation4], %s300
      %s302 = sshll.u32 [#allocation3], 4
      %s303 = int_to_ptr.vmem [resolvable:$true] %s302
      %308 = dma.vmem_to_hbm [thread:$0]  %s303, 256, %s5, [#allocation4], 128, 128, 8
    $region33: #{tpu_custom_call.1} parent=1 // pred_fallthru
      _
    // Predicated region
    $region34: #{tpu_custom_call.1} parent=1 // pred_check
      _
    $region35: #{tpu_custom_call.1} parent=1 // pred_check_branch
      %310 = sbr.rel (0) target = $region37
    $region36: #{tpu_custom_call.1} parent=1 // pred_region
      %311 = dma.done [#allocation4], 256
    $region37: #{tpu_custom_call.1} parent=1 // pred_fallthru
      _
    %312 = vsyncpa [#allocation4], 1

</llo_original>
